<compile_context>
chip_gen: v7x
topology: tpu7x:2x2x1
jax: 0.10.0
libtpu: 0.0.40
codegen_flags: <defaults>
</compile_context>

<pallas_src>
import math
from functools import partial

import jax
import jax.numpy as jnp
from jax.experimental import pallas as pl
from jax.experimental.pallas import tpu as pltpu

DROPOUT_P = 0.5


# ----------------------------------------------------------------------------- setup
def make_pos_encoding(max_len: int, dim_model: int) -> jnp.ndarray:
    """Deterministic sinusoidal table, shape (max_len, 1, dim_model) — matches the buffer."""
    positions = jnp.arange(max_len, dtype=jnp.float32)[:, None]
    division_term = jnp.exp(
        jnp.arange(0, dim_model, 2, dtype=jnp.float32) * (-math.log(10000.0) / dim_model)
    )
    pe = jnp.zeros((max_len, dim_model), dtype=jnp.float32)
    pe = pe.at[:, 0::2].set(jnp.sin(positions * division_term))
    pe = pe.at[:, 1::2].set(jnp.cos(positions * division_term))
    return pe[:, None, :]  # (max_len, 1, dim_model)


# ----------------------------------------------------------------------------- kernels
def _mask_and_scale(y, bits, keep_threshold, scale):
    """Dropout in the input dtype: keep iff bits >= p*2^32, scale kept values by 1/(1-p)."""
    if bits.dtype != jnp.uint32:
        bits = pltpu.bitcast(bits, jnp.uint32)
    keep = bits >= jnp.uint32(keep_threshold)
    scale_v = jnp.asarray(scale, dtype=y.dtype)          # stay in x's dtype (bf16-friendly)
    return jnp.where(keep, y * scale_v, jnp.zeros_like(y))


def _pe_dropout_prng_kernel(seed_ref, x_ref, pe_ref, o_ref, *,
                            batch, dim, keep_threshold, scale, lane_aligned):
    """TPU path: hardware PRNG.  x_ref:(tS, B*D)  pe_ref:(tS, D)  o_ref:(tS, B*D)."""
    # Two seed words (base seed, tile id) -> decorrelated per-tile streams.
    pltpu.prng_seed(seed_ref[0], pl.program_id(0))

    pe = pe_ref[...]
    if lane_aligned:
        # D is a multiple of 128: add the PE tile per-batch at lane-tile-aligned
        # offsets; no lane-replicated PE array is materialized (v7x VPU/XLU relief).
        for b in range(batch):
            lo, hi = b * dim, (b + 1) * dim
            y = x_ref[:, lo:hi] + pe
            bits = pltpu.prng_random_bits(y.shape)       # each call advances the PRNG
            o_ref[:, lo:hi] = _mask_and_scale(y, bits, keep_threshold, scale)
    else:
        y = x_ref[...] + jnp.tile(pe, (1, batch))
        bits = pltpu.prng_random_bits(y.shape)
        o_ref[...] = _mask_and_scale(y, bits, keep_threshold, scale)


def _pe_dropout_bits_kernel(x_ref, pe_ref, bits_ref, o_ref, *,
                            batch, dim, keep_threshold, scale, lane_aligned):
    """Fallback path (non-TPU backends): random bits precomputed outside."""
    pe = pe_ref[...]
    if lane_aligned:
        for b in range(batch):
            lo, hi = b * dim, (b + 1) * dim
            y = x_ref[:, lo:hi] + pe
            o_ref[:, lo:hi] = _mask_and_scale(y, bits_ref[:, lo:hi], keep_threshold, scale)
    else:
        y = x_ref[...] + jnp.tile(pe, (1, batch))
        o_ref[...] = _mask_and_scale(y, bits_ref[...], keep_threshold, scale)


# ----------------------------------------------------------------------------- wrapper
def _choose_tile_rows(num_rows: int, row_elems: int, bytes_per_elem: int,
                      target_bytes: int = 4 << 20, min_tiles: int = 8) -> int:
    """S-tile (multiple of 8, or full S) targeting ~4 MiB blocks, with enough tiles
    that the pipeline double-buffers and v7x's two TensorCores both get work."""
    if num_rows <= 8:
        return num_rows
    rows = max(8, (target_bytes // max(1, row_elems * bytes_per_elem)) // 8 * 8)
    rows = min(rows, num_rows)
    if num_rows >= 8 * min_tiles:
        cap = max(8, (num_rows // min_tiles) // 8 * 8)   # keep grid >= min_tiles
        rows = min(rows, cap)
    return int(rows)


def positional_encoding_forward(token_embedding: jnp.ndarray,
                                pos_encoding: jnp.ndarray,
                                *, dropout_p: float = DROPOUT_P,
                                seed: int = 0) -> jnp.ndarray:
    """token_embedding: (S, B, D); pos_encoding: (max_len, 1, D). Training-mode dropout."""
    S, B, D = token_embedding.shape
    dtype = token_embedding.dtype
    itemsize = jnp.dtype(dtype).itemsize

    pe2 = pos_encoding[:S, 0, :].astype(dtype)            # (S, D)  -- the [:size(0)] slice
    x2 = token_embedding.reshape(S, B * D)                # lane-dense 2D slab

    keep_threshold = min(int(round(dropout_p * (2 ** 32))), 2 ** 32 - 1)
    scale = 1.0 / (1.0 - dropout_p) if dropout_p < 1.0 else 0.0
    lane_aligned = (D % 128 == 0)

    tile_s = _choose_tile_rows(S, B * D, itemsize)
    grid = (pl.cdiv(S, tile_s),)
    x_block = (tile_s, B * D)
    pe_block = (tile_s, D)

    # Explicit scoped-VMEM budget: x + out double-buffered (+ small PE) with headroom.
    # >= 32 MiB so 4 MiB blocks clear v5e's 16 MiB default; <= 64 MiB for v7x physical.
    block_bytes = tile_s * B * D * itemsize
    pe_bytes = tile_s * D * itemsize
    needed = 2 * (2 * block_bytes + pe_bytes)
    vmem_limit = int(min(64 << 20, max(32 << 20, 2 * needed)))

    common = dict(batch=B, dim=D, keep_threshold=keep_threshold,
                  scale=scale, lane_aligned=lane_aligned)

    if jax.default_backend() == "tpu":
        seed_arr = jnp.asarray([seed], dtype=jnp.int32)
        kernel = partial(_pe_dropout_prng_kernel, **common)
        out2 = pl.pallas_call(
            kernel,
            out_shape=jax.ShapeDtypeStruct((S, B * D), dtype),
            grid_spec=pltpu.PrefetchScalarGridSpec(
                num_scalar_prefetch=1,                    # seed lands in SMEM
                grid=grid,
                in_specs=[
                    pl.BlockSpec(x_block, lambda i, seed_ref: (i, 0)),
                    pl.BlockSpec(pe_block, lambda i, seed_ref: (i, 0)),
                ],
                out_specs=pl.BlockSpec(x_block, lambda i, seed_ref: (i, 0)),
            ),
            compiler_params=pltpu.CompilerParams(
                dimension_semantics=("parallel",),        # let v7x shard S-tiles over 2 TCs
                vmem_limit_bytes=vmem_limit,
            ),
        )(seed_arr, x2, pe2)
    else:
        # TPU PRNG primitives have no CPU/interpret lowering; feed precomputed bits.
        bits = jax.random.bits(jax.random.PRNGKey(seed), (S, B * D), dtype=jnp.uint32)
        kernel = partial(_pe_dropout_bits_kernel, **common)
        out2 = pl.pallas_call(
            kernel,
            out_shape=jax.ShapeDtypeStruct((S, B * D), dtype),
            grid=grid,
            in_specs=[
                pl.BlockSpec(x_block, lambda i: (i, 0)),
                pl.BlockSpec(pe_block, lambda i: (i, 0)),
                pl.BlockSpec(x_block, lambda i: (i, 0)),
            ],
            out_specs=pl.BlockSpec(x_block, lambda i: (i, 0)),
        )(x2, pe2, bits)

    return out2.reshape(S, B, D)


# ----------------------------------------------------------------------------- demo
if __name__ == "__main__":
    # Small shapes consistent with the module's (S, N, E) forward convention;
    # DIM matches the module's dim_model default family and keeps lanes dense.
    SEQ, BATCH, DIM = 8, 2, 256
    MAX_LEN = 64

    key = jax.random.PRNGKey(0)
    x = jax.random.normal(key, (SEQ, BATCH, DIM), dtype=jnp.float32)

    pos_encoding = make_pos_encoding(MAX_LEN, DIM)

    out = positional_encoding_forward(x, pos_encoding, dropout_p=DROPOUT_P, seed=0)
    out = jax.block_until_ready(out)

    assert out.shape == (SEQ, BATCH, DIM) and out.dtype == jnp.float32

    # Sanity: every element is either 0 (dropped) or 2 * (x + pe) (kept, p=0.5),
    # and the mask is not degenerate.
    expected_kept = (x + pos_encoding[:SEQ]) * (1.0 / (1.0 - DROPOUT_P))
    is_zero = jnp.isclose(out, 0.0, atol=1e-6)
    is_kept = jnp.isclose(out, expected_kept, atol=1e-5, rtol=1e-5)
    assert bool(jnp.all(is_zero | is_kept)), "dropout output inconsistent with add+scale"
    kept_frac = float(jnp.mean(is_kept.astype(jnp.float32)))
    assert 0.0 < kept_frac < 1.0, f"degenerate dropout mask (kept_frac={kept_frac})"

    print("KERNEL_OK")
</pallas_src>

<mosaic_0001>
module attributes {stable_mosaic.version = 11 : i64} {
  func.func @_pe_dropout_bits_kernel(%arg0: i32, %arg1: memref<8x512xf32, #tpu.memory_space<vmem>>, %arg2: memref<8x256xf32, #tpu.memory_space<vmem>>, %arg3: memref<8x512xi32, #tpu.memory_space<vmem>>, %arg4: memref<8x512xf32, #tpu.memory_space<vmem>>) attributes {dimension_semantics = [#tpu.dimension_semantics<arbitrary>], iteration_bounds = array<i64: 1>, scalar_prefetch = 0 : i64, scratch_operands = 0 : i64, tpu.core_type = #tpu.core_type<tc>, window_params = [{transform_indices = @transform_0, window_bounds = array<i64: 8, 512>}, {transform_indices = @transform_1, window_bounds = array<i64: 8, 256>}, {transform_indices = @transform_2, window_bounds = array<i64: 8, 512>}, {transform_indices = @transform_3, window_bounds = array<i64: 8, 512>}]} {
    %c0 = arith.constant 0 : index
    %c0_0 = arith.constant 0 : index
    %0 = vector.load %arg2[%c0, %c0_0] : memref<8x256xf32, #tpu.memory_space<vmem>>, vector<8x256xf32>
    %c0_1 = arith.constant 0 : index
    %c0_2 = arith.constant 0 : index
    %1 = vector.load %arg1[%c0_1, %c0_2] : memref<8x512xf32, #tpu.memory_space<vmem>>, vector<8x256xf32>
    %2 = arith.addf %1, %0 : vector<8x256xf32>
    %c0_3 = arith.constant 0 : index
    %c0_4 = arith.constant 0 : index
    %3 = vector.load %arg3[%c0_3, %c0_4] : memref<8x512xi32, #tpu.memory_space<vmem>>, vector<8x256xi32>
    %c-2147483648_i32 = arith.constant -2147483648 : i32
    %4 = vector.broadcast %c-2147483648_i32 : i32 to vector<8x256xi32>
    %5 = arith.cmpi uge, %3, %4 : vector<8x256xi32>
    %cst = arith.constant 2.000000e+00 : f32
    %6 = vector.broadcast %cst : f32 to vector<8x256xf32>
    %7 = arith.mulf %2, %6 : vector<8x256xf32>
    %cst_5 = arith.constant 0.000000e+00 : f32
    %8 = vector.broadcast %cst_5 : f32 to vector<8x256xf32>
    %9 = arith.select %5, %7, %8 : vector<8x256xi1>, vector<8x256xf32>
    %c0_6 = arith.constant 0 : index
    %c0_7 = arith.constant 0 : index
    %10 = vector.load %arg4[%c0_6, %c0_7] : memref<8x512xf32, #tpu.memory_space<vmem>>, vector<8x256xf32>
    tpu.vector_store %arg4[%c0_6, %c0_7], %9 {strides = array<i32>} : memref<8x512xf32, #tpu.memory_space<vmem>>, vector<8x256xf32>,
    %c0_8 = arith.constant 0 : index
    %c256 = arith.constant 256 : index
    %11 = vector.load %arg1[%c0_8, %c256] : memref<8x512xf32, #tpu.memory_space<vmem>>, vector<8x256xf32>
    %12 = arith.addf %11, %0 : vector<8x256xf32>
    %c0_9 = arith.constant 0 : index
    %c256_10 = arith.constant 256 : index
    %13 = vector.load %arg3[%c0_9, %c256_10] : memref<8x512xi32, #tpu.memory_space<vmem>>, vector<8x256xi32>
    %c-2147483648_i32_11 = arith.constant -2147483648 : i32
    %14 = vector.broadcast %c-2147483648_i32_11 : i32 to vector<8x256xi32>
    %15 = arith.cmpi uge, %13, %14 : vector<8x256xi32>
    %cst_12 = arith.constant 2.000000e+00 : f32
    %16 = vector.broadcast %cst_12 : f32 to vector<8x256xf32>
    %17 = arith.mulf %12, %16 : vector<8x256xf32>
    %cst_13 = arith.constant 0.000000e+00 : f32
    %18 = vector.broadcast %cst_13 : f32 to vector<8x256xf32>
    %19 = arith.select %15, %17, %18 : vector<8x256xi1>, vector<8x256xf32>
    %c0_14 = arith.constant 0 : index
    %c256_15 = arith.constant 256 : index
    %20 = vector.load %arg4[%c0_14, %c256_15] : memref<8x512xf32, #tpu.memory_space<vmem>>, vector<8x256xf32>
    tpu.vector_store %arg4[%c0_14, %c256_15], %19 {strides = array<i32>} : memref<8x512xf32, #tpu.memory_space<vmem>>, vector<8x256xf32>,
    return
  }
  func.func @transform_0(%arg0: i32) -> (i32, i32) {
    %c0_i32 = arith.constant 0 : i32
    %c0_i32_0 = arith.constant 0 : i32
    return %arg0, %c0_i32 : i32, i32
  }
  func.func @transform_1(%arg0: i32) -> (i32, i32) {
    %c0_i32 = arith.constant 0 : i32
    %c0_i32_0 = arith.constant 0 : i32
    return %arg0, %c0_i32 : i32, i32
  }
  func.func @transform_2(%arg0: i32) -> (i32, i32) {
    %c0_i32 = arith.constant 0 : i32
    %c0_i32_0 = arith.constant 0 : i32
    return %arg0, %c0_i32 : i32, i32
  }
  func.func @transform_3(%arg0: i32) -> (i32, i32) {
    %c0_i32 = arith.constant 0 : i32
    %c0_i32_0 = arith.constant 0 : i32
    return %arg0, %c0_i32 : i32, i32
  }
}

</mosaic_0001>

<llo_original>
// kernel: tpu_custom_call.1
$region0: #{tpu_custom_call.1}
  #allocation0 [shape = 'u32[]', space=smem, size = 0x4, offset = 0x4, fixed_abs, tag = 'smem constant byte address 0x4 - core index']
  #allocation1 [shape = 'u32[144,128]{1,0:T(1,128)}', space=vmem, size = 0x12000, scoped, tag = 'internal scratch']
  %s0 = inlined_call_operand.hbm [shape: f32[8,512], index: 0, kind: input, shape index: {}]
  %s1 = inlined_call_operand.hbm [shape: f32[8,256], index: 1, kind: input, shape index: {}]
  %s2 = inlined_call_operand.hbm [shape: u32[8,512], index: 2, kind: input, shape index: {}]
  %s3 = inlined_call_operand.hbm [shape: f32[8,512], index: 3, kind: output, shape index: {}]
  %s4 = sld [smem:[#allocation0]]
  $region34: #{tpu_custom_call.1} parent=0
    _
  %s6 = ssub.s32 1, %s4
  %s7 = scalar_select 0, %s6, %s4
  $region1: #{tpu_custom_call.1} parent=0
    #allocation2 [shape = 'u8[16384]{0}', space=vmem, size = 0x4000, scoped, tag = 'input window, operand 0, single buffered']
    #allocation3 [shape = 's32[1]{0}', space=sflag, size = 0x4, scoped, tag = 'scoped memory for tpu_custom_call.1']
    #allocation4 [shape = 's32[1]{0}', space=sflag, size = 0x4, scoped, tag = 'scoped memory for tpu_custom_call.1']
    #allocation5 [shape = 'u8[8192]{0}', space=vmem, size = 0x2000, scoped, tag = 'input window, operand 1, single buffered']
    #allocation6 [shape = 's32[1]{0}', space=sflag, size = 0x4, scoped, tag = 'scoped memory for tpu_custom_call.1']
    #allocation7 [shape = 'u8[16384]{0}', space=vmem, size = 0x4000, scoped, tag = 'input window, operand 2, single buffered']
    #allocation8 [shape = 'u8[16384]{0}', space=vmem, size = 0x4000, scoped, tag = 'output window, operand 0, single buffered']
    %8 = vsyncpa [#allocation3], 0
    %9 = vsyncpa [#allocation6], 0
    %10 = vsyncpa [#allocation4], 0
    // Predicated region
    $region2: #{tpu_custom_call.1} parent=1 // pred_check
      _
    $region3: #{tpu_custom_call.1} parent=1 // pred_check_branch
      %12 = sbr.rel (0) target = $region5
    $region4: #{tpu_custom_call.1} parent=1 // pred_region
      %s14 = ssub.s32 512, 512
      %15 = vsyncadd [#allocation3], %s14
      %s17 = sshll.u32 [#allocation2], 4
      %s18 = int_to_ptr.vmem [resolvable:$true] %s17
      %20 = dma.hbm_to_vmem [thread:$0]  %s0, 512, %s18, [#allocation3]
    $region5: #{tpu_custom_call.1} parent=1 // pred_fallthru
      _
    // Predicated region
    $region6: #{tpu_custom_call.1} parent=1 // pred_check
      _
    $region7: #{tpu_custom_call.1} parent=1 // pred_check_branch
      %22 = sbr.rel (0) target = $region9
    $region8: #{tpu_custom_call.1} parent=1 // pred_region
      %s24 = ssub.s32 256, 256
      %25 = vsyncadd [#allocation6], %s24
      %s27 = sshll.u32 [#allocation5], 4
      %s28 = int_to_ptr.vmem [resolvable:$true] %s27
      %30 = dma.hbm_to_vmem [thread:$0]  %s1, 256, %s28, [#allocation6]
    $region9: #{tpu_custom_call.1} parent=1 // pred_fallthru
      _
    // Predicated region
    $region10: #{tpu_custom_call.1} parent=1 // pred_check
      _
    $region11: #{tpu_custom_call.1} parent=1 // pred_check_branch
      %32 = sbr.rel (0) target = $region13
    $region12: #{tpu_custom_call.1} parent=1 // pred_region
      %s34 = ssub.s32 512, 512
      %35 = vsyncadd [#allocation6], %s34
      %s37 = sshll.u32 [#allocation7], 4
      %s38 = int_to_ptr.vmem [resolvable:$true] %s37
      %40 = dma.hbm_to_vmem [thread:$0]  %s2, 512, %s38, [#allocation6]
    $region13: #{tpu_custom_call.1} parent=1 // pred_fallthru
      _
    // Predicated region
    $region14: #{tpu_custom_call.1} parent=1 // pred_check
      _
    $region15: #{tpu_custom_call.1} parent=1 // pred_check_branch
      %42 = sbr.rel (0) target = $region17
    $region16: #{tpu_custom_call.1} parent=1 // pred_region
      %43 = dma.done [#allocation3], 512
    $region17: #{tpu_custom_call.1} parent=1 // pred_fallthru
      _
    // Predicated region
    $region18: #{tpu_custom_call.1} parent=1 // pred_check
      _
    $region19: #{tpu_custom_call.1} parent=1 // pred_check_branch
      %45 = sbr.rel (0) target = $region21
    $region20: #{tpu_custom_call.1} parent=1 // pred_region
      %46 = dma.done [#allocation6], 256
    $region21: #{tpu_custom_call.1} parent=1 // pred_fallthru
      _
    // Predicated region
    $region22: #{tpu_custom_call.1} parent=1 // pred_check
      _
    $region23: #{tpu_custom_call.1} parent=1 // pred_check_branch
      %48 = sbr.rel (0) target = $region25
    $region24: #{tpu_custom_call.1} parent=1 // pred_region
      %49 = dma.done [#allocation6], 512
    $region25: #{tpu_custom_call.1} parent=1 // pred_fallthru
      _
    %v50 = vld [vmem:[#allocation5] sm:$0xff]
    %v51 = vld [vmem:[#allocation5 + $0x8] sm:$0xff]
    %v52 = vld [vmem:[#allocation2] sm:$0xff]
    %v53 = vld [vmem:[#allocation2 + $0x8] sm:$0xff]
    %v54 = vadd.f32 %v52, %v50
    %v55 = vadd.f32 %v53, %v51
    %v56 = vld [vmem:[#allocation7] sm:$0xff]
    %v57 = vld [vmem:[#allocation7 + $0x8] sm:$0xff]
    %vm58 = vcmp.ge.u32.totalorder %v56, 2147483648
    %vm59 = vcmp.ge.u32.totalorder %v57, 2147483648
    %v60 = vmul.f32 %v54, 2.0
    %v61 = vmul.f32 %v55, 2.0
    %v62 = vsel %vm58, %v60, 0.0
    %v63 = vsel %vm59, %v61, 0.0
    %64 = vst [vmem:[#allocation8] sm:$0xff] %v62
    %65 = vst [vmem:[#allocation8 + $0x8] sm:$0xff] %v63
    %v66 = vld [vmem:[#allocation2 + $0x10] sm:$0xff]
    %v67 = vld [vmem:[#allocation2 + $0x18] sm:$0xff]
    %v68 = vadd.f32 %v66, %v50
    %v69 = vadd.f32 %v67, %v51
    %v70 = vld [vmem:[#allocation7 + $0x10] sm:$0xff]
    %v71 = vld [vmem:[#allocation7 + $0x18] sm:$0xff]
    %vm72 = vcmp.ge.u32.totalorder %v70, 2147483648
    %vm73 = vcmp.ge.u32.totalorder %v71, 2147483648
    %v74 = vmul.f32 %v68, 2.0
    %v75 = vmul.f32 %v69, 2.0
    %v76 = vsel %vm72, %v74, 0.0
    %v77 = vsel %vm73, %v75, 0.0
    %78 = vst [vmem:[#allocation8 + $0x10] sm:$0xff] %v76
    %79 = vst [vmem:[#allocation8 + $0x18] sm:$0xff] %v77
    // Predicated region
    $region26: #{tpu_custom_call.1} parent=1 // pred_check
      _
    $region27: #{tpu_custom_call.1} parent=1 // pred_check_branch
      %81 = sbr.rel (0) target = $region29
    $region28: #{tpu_custom_call.1} parent=1 // pred_region
      %s83 = ssub.s32 512, 512
      %84 = vsyncadd [#allocation4], %s83
      %s86 = sshll.u32 [#allocation8], 4
      %s87 = int_to_ptr.vmem [resolvable:$true] %s86
      %89 = dma.vmem_to_hbm [thread:$0]  %s87, 512, %s3, [#allocation4]
    $region29: #{tpu_custom_call.1} parent=1 // pred_fallthru
      _
    // Predicated region
    $region30: #{tpu_custom_call.1} parent=1 // pred_check
      _
    $region31: #{tpu_custom_call.1} parent=1 // pred_check_branch
      %91 = sbr.rel (0) target = $region33
    $region32: #{tpu_custom_call.1} parent=1 // pred_region
      %92 = dma.done [#allocation4], 512
    $region33: #{tpu_custom_call.1} parent=1 // pred_fallthru
      _
    %93 = vsyncpa [#allocation3], 1
    %94 = vsyncpa [#allocation6], 1
    %95 = vsyncpa [#allocation4], 1

</llo_original>
